<compile_context>
chip_gen: v7x
topology: tpu7x:2x2x1
jax: 0.10.0
libtpu: 0.0.40
codegen_flags: <defaults>
</compile_context>

<pallas_src>
import functools

import jax
import jax.numpy as jnp
from jax import lax
from jax.experimental import pallas as pl
from jax.experimental.pallas import tpu as pltpu


# ----------------------------------------------------------------------------
# Small helpers
# ----------------------------------------------------------------------------

def _vmem_limit_bytes():
    """Generation-aware VMEM budget (~75% of physical VMEM)."""
    try:
        cap = pltpu.get_tpu_info().vmem_capacity_bytes
    except Exception:
        cap = 64 * 1024 * 1024          # conservative fallback (v7x-sized)
    return int(cap) * 3 // 4


def _largest_divisor_tile(n, cap):
    """Largest divisor of n that is <= cap (prefers the full extent)."""
    cap = min(cap, n)
    for t in range(cap, 0, -1):
        if n % t == 0:
            return t
    return n


_SINGLE_BUFFER_OK = None


def _single_buffer_supported():
    """Probe once whether pipeline_mode=pl.Buffered(1) lowers on this jax/TPU."""
    global _SINGLE_BUFFER_OK
    if _SINGLE_BUFFER_OK is None:
        try:
            def _probe(x_ref, o_ref):
                o_ref[...] = x_ref[...]
            out = pl.pallas_call(
                _probe,
                out_shape=jax.ShapeDtypeStruct((8, 128), jnp.float32),
                grid=(2,),
                in_specs=[pl.BlockSpec((8, 128), lambda i: (0, 0),
                                       pipeline_mode=pl.Buffered(1))],
                out_specs=pl.BlockSpec((8, 128), lambda i: (0, 0)),
            )(jnp.zeros((8, 128), jnp.float32))
            jax.block_until_ready(out)
            _SINGLE_BUFFER_OK = True
        except Exception:
            _SINGLE_BUFFER_OK = False
    return _SINGLE_BUFFER_OK


def _const_spec(shape):
    """BlockSpec for grid-invariant operands (weights/biases): single-buffered."""
    nd = len(shape)
    idx = lambda *_: (0,) * nd
    if _single_buffer_supported():
        return pl.BlockSpec(shape, idx, pipeline_mode=pl.Buffered(1))
    return pl.BlockSpec(shape, idx)


def _ln(h, w, b, eps=1e-5):
    mu = jnp.mean(h, axis=-1, keepdims=True)
    var = jnp.mean(jnp.square(h - mu), axis=-1, keepdims=True)
    return (h - mu) * lax.rsqrt(var + eps) * w + b


# ----------------------------------------------------------------------------
# Kernel 1: patch projection + bias + pos/temporal embed + mask-token mix
# ----------------------------------------------------------------------------

def _patch_embed_kernel(p_ref, w_ref, b_ref, pos_ref, tem_ref, m_ref, tok_ref,
                        o_ref):
    # p:(1,1,tp,K) bf16   w:(K,E) bf16   b:(1,E) f32   pos:(tp,E) f32
    # tem:(1,1,E) f32     m:(1,1,tp,1) f32   tok:(1,E) f32   o:(1,1,tp,E) bf16
    y = jnp.dot(p_ref[0, 0], w_ref[...], preferred_element_type=jnp.float32)
    y = y + b_ref[...] + pos_ref[...] + tem_ref[0]
    wv = m_ref[0, 0]                                    # (tp, 1)
    y = y * (1.0 - wv) + tok_ref[...] * wv              # mask-token mix (fused)
    o_ref[0, 0] = y.astype(o_ref.dtype)


def patch_embed_pallas(patches, wT, b, pos, tem, w, mask_token, vmem_limit):
    B, T, NP, K = patches.shape
    E = wT.shape[1]
    tp = _largest_divisor_tile(NP, 512)
    return pl.pallas_call(
        _patch_embed_kernel,
        out_shape=jax.ShapeDtypeStruct((B, T, NP, E), jnp.bfloat16),
        grid=(B, T, NP // tp),
        in_specs=[
            pl.BlockSpec((1, 1, tp, K), lambda b_, t_, p_: (b_, t_, p_, 0)),
            _const_spec((K, E)),                         # patch projection weight
            _const_spec((1, E)),                         # conv bias
            pl.BlockSpec((tp, E), lambda b_, t_, p_: (p_, 0)),       # pos rows
            pl.BlockSpec((1, 1, E), lambda b_, t_, p_: (t_, 0, 0)),  # temporal row
            pl.BlockSpec((1, 1, tp, 1), lambda b_, t_, p_: (b_, t_, p_, 0)),
            _const_spec((1, E)),                         # mask token
        ],
        out_specs=pl.BlockSpec((1, 1, tp, E), lambda b_, t_, p_: (b_, t_, p_, 0)),
        compiler_params=pltpu.CompilerParams(
            dimension_semantics=("parallel", "parallel", "parallel"),
            vmem_limit_bytes=vmem_limit),
    )(patches, wT, b, pos, tem, w, mask_token)


# ----------------------------------------------------------------------------
# Kernel 2: LN1 + qkv projection (scale folded into q)
# ----------------------------------------------------------------------------

def _qkv_kernel(x_ref, ln1w_ref, ln1b_ref, qkvw_ref, qkvb_ref, q_ref, kv_ref,
                *, dim, scale):
    x = x_ref[0].astype(jnp.float32)                     # (tr, C)
    h = _ln(x, ln1w_ref[...], ln1b_ref[...])
    qkv = (jnp.dot(h.astype(jnp.bfloat16), qkvw_ref[...],
                   preferred_element_type=jnp.float32) + qkvb_ref[...])  # (tr,3C)
    q = qkv[:, :dim] * scale              # fold attention scale into q (cheap)
    q_ref[0] = q.astype(q_ref.dtype)
    kv_ref[0] = qkv[:, dim:].astype(kv_ref.dtype)


def qkv_pallas(x, blk, num_heads, vmem_limit):
    B, N, C = x.shape
    head_dim = C // num_heads
    scale = float(head_dim) ** -0.5
    tr = _largest_divisor_tile(N, 512)
    kern = functools.partial(_qkv_kernel, dim=C, scale=scale)
    return pl.pallas_call(
        kern,
        out_shape=(jax.ShapeDtypeStruct((B, N, C), jnp.bfloat16),
                   jax.ShapeDtypeStruct((B, N, 2 * C), jnp.bfloat16)),
        grid=(B, N // tr),
        in_specs=[pl.BlockSpec((1, tr, C), lambda b, r: (b, r, 0)),
                  _const_spec((1, C)), _const_spec((1, C)),
                  _const_spec((C, 3 * C)), _const_spec((1, 3 * C))],
        out_specs=(pl.BlockSpec((1, tr, C), lambda b, r: (b, r, 0)),
                   pl.BlockSpec((1, tr, 2 * C), lambda b, r: (b, r, 0))),
        compiler_params=pltpu.CompilerParams(
            dimension_semantics=("parallel", "parallel"),
            vmem_limit_bytes=vmem_limit),
    )(x, blk["ln1_w"], blk["ln1_b"], blk["qkv_wt"], blk["qkv_b"])


# ----------------------------------------------------------------------------
# Kernel 3: flash attention (kv-tiled) + proj + residual + LN2 + MLP + residual
#           [+ fused final LayerNorm on the last block]
# ----------------------------------------------------------------------------

def _attn_mlp_kernel(x_ref, q_ref, kv_ref, projw_ref, projb_ref,
                     ln2w_ref, ln2b_ref, fc1w_ref, fc1b_ref, fc2w_ref, fc2b_ref,
                     *rest, num_heads, head_dim, kv_tile, apply_final_ln):
    if apply_final_ln:
        lnfw_ref, lnfb_ref, o_ref = rest
    else:
        (o_ref,) = rest

    H, d = num_heads, head_dim
    C = H * d
    tq = q_ref.shape[1]
    N = kv_ref.shape[1]
    n_kv = N // kv_tile

    x = x_ref[0].astype(jnp.float32)                     # (tq, C) residual stream
    # q is pre-scaled in the qkv kernel.
    q = q_ref[0].reshape(tq, H, d).transpose(1, 0, 2)    # (H, tq, d) bf16

    m0 = jnp.full((H, tq, 1), -1e30, jnp.float32)
    l0 = jnp.zeros((H, tq, 1), jnp.float32)
    acc0 = jnp.zeros((H, tq, d), jnp.float32)

    def kv_step(j, carry):
        m_i, l_i, acc = carry
        start = j * kv_tile
        if n_kv > 1:
            start = pl.multiple_of(start, kv_tile)
        kv_t = kv_ref[0, pl.ds(start, kv_tile), :]                   # (tk, 2C)
        # TODO(synk): emit K/V in head-major layout from the qkv kernel to
        #   drop these per-tile relayouts at real sizes.
        k_t = kv_t[:, :C].reshape(kv_tile, H, d).transpose(1, 0, 2)  # (H, tk, d)
        v_t = kv_t[:, C:].reshape(kv_tile, H, d).transpose(1, 0, 2)
        s = jnp.einsum('hqd,hkd->hqk', q, k_t,
                       preferred_element_type=jnp.float32)           # (H, tq, tk)
        m_new = jnp.maximum(m_i, jnp.max(s, axis=-1, keepdims=True))
        alpha = jnp.exp(m_i - m_new)
        p = jnp.exp(s - m_new)
        l_new = alpha * l_i + jnp.sum(p, axis=-1, keepdims=True)
        acc_new = alpha * acc + jnp.einsum(
            'hqk,hkd->hqd', p.astype(jnp.bfloat16), v_t,
            preferred_element_type=jnp.float32)
        return m_new, l_new, acc_new

    if n_kv == 1:
        m_i, l_i, acc = kv_step(0, (m0, l0, acc0))
    else:
        m_i, l_i, acc = lax.fori_loop(0, n_kv, kv_step, (m0, l0, acc0))

    o = acc * pl.reciprocal(l_i, approx=True)            # (H, tq, d)
    attn = o.transpose(1, 0, 2).reshape(tq, C)
    attn = (jnp.dot(attn.astype(jnp.bfloat16), projw_ref[...],
                    preferred_element_type=jnp.float32) + projb_ref[...])
    x = x + attn

    # ---- MLP ----
    h2 = _ln(x, ln2w_ref[...], ln2b_ref[...])
    h2 = (jnp.dot(h2.astype(jnp.bfloat16), fc1w_ref[...],
                  preferred_element_type=jnp.float32) + fc1b_ref[...])
    # exact (erf) GELU to match nn.GELU default
    h2 = 0.5 * h2 * (1.0 + lax.erf(h2 * 0.7071067811865476))
    h2 = (jnp.dot(h2.astype(jnp.bfloat16), fc2w_ref[...],
                  preferred_element_type=jnp.float32) + fc2b_ref[...])
    x = x + h2

    if apply_final_ln:
        x = _ln(x, lnfw_ref[...], lnfb_ref[...])
    o_ref[0] = x.astype(o_ref.dtype)


def attn_mlp_pallas(x, q, kv, blk, num_heads, lnf_w, lnf_b, apply_final_ln,
                    vmem_limit):
    B, N, C = x.shape
    Hd = blk["fc1_wt"].shape[1]
    head_dim = C // num_heads
    tq = _largest_divisor_tile(N, 256)
    tk = _largest_divisor_tile(N, 512)
    kern = functools.partial(_attn_mlp_kernel, num_heads=num_heads,
                             head_dim=head_dim, kv_tile=tk,
                             apply_final_ln=apply_final_ln)

    in_specs = [
        pl.BlockSpec((1, tq, C), lambda b, i: (b, i, 0)),      # residual tile
        pl.BlockSpec((1, tq, C), lambda b, i: (b, i, 0)),      # q tile (pre-scaled)
        pl.BlockSpec((1, N, 2 * C), lambda b, i: (b, 0, 0)),   # full K,V of batch b
        _const_spec((C, C)), _const_spec((1, C)),              # proj
        _const_spec((1, C)), _const_spec((1, C)),              # ln2
        _const_spec((C, Hd)), _const_spec((1, Hd)),            # fc1
        _const_spec((Hd, C)), _const_spec((1, C)),             # fc2
    ]
    args = [x, q, kv, blk["proj_wt"], blk["proj_b"], blk["ln2_w"], blk["ln2_b"],
            blk["fc1_wt"], blk["fc1_b"], blk["fc2_wt"], blk["fc2_b"]]
    if apply_final_ln:
        in_specs += [_const_spec((1, C)), _const_spec((1, C))]
        args += [lnf_w, lnf_b]

    flops = int(B * (4 * N * N * C + 2 * N * C * C + 4 * N * C * Hd))
    transc = int(B * (num_heads * N * N + N * Hd))
    bytes_acc = int(B * N * (C + C + 2 * C + C) * 2            # x, q, kv, out (bf16)
                    + (C * C + 2 * C * Hd) * 2                 # bf16 weights
                    + (6 * C + Hd) * 4)                        # biases + LN params
    ce = pl.CostEstimate(flops=flops, transcendentals=transc,
                         bytes_accessed=bytes_acc)

    out_dtype = jnp.float32 if apply_final_ln else jnp.bfloat16
    return pl.pallas_call(
        kern,
        out_shape=jax.ShapeDtypeStruct((B, N, C), out_dtype),
        grid=(B, N // tq),
        in_specs=in_specs,
        out_specs=pl.BlockSpec((1, tq, C), lambda b, i: (b, i, 0)),
        compiler_params=pltpu.CompilerParams(
            dimension_semantics=("parallel", "parallel"),
            vmem_limit_bytes=vmem_limit),
        cost_estimate=ce,
    )(*args)


# ----------------------------------------------------------------------------
# Parameter init (deterministic, synthetic — no checkpoint loading)
# ----------------------------------------------------------------------------

def init_params(key, img_size, patch_size, in_chans, embed_dim, depth,
                num_heads, mlp_ratio):
    gp = img_size // patch_size
    num_patches = gp * gp
    hidden = int(embed_dim * mlp_ratio)
    keys = jax.random.split(key, 4 + depth)

    def nrm(k, shape, std=0.02):
        return (std * jax.random.normal(k, shape)).astype(jnp.float32)

    p = {}
    conv_w = nrm(keys[0], (embed_dim, in_chans, 1, patch_size, patch_size))
    # Conv3d(kernel=(1,P,P), stride=(1,P,P)) == matmul over flattened patches.
    p["patch_wT"] = conv_w.reshape(
        embed_dim, in_chans * patch_size * patch_size).T.astype(jnp.bfloat16)
    p["patch_b"] = nrm(keys[1], (1, embed_dim))
    p["pos_embed"] = nrm(keys[2], (1, 1, num_patches, embed_dim))
    p["temporal_embed"] = nrm(keys[3], (1, 16, 1, embed_dim))
    p["mask_token"] = nrm(jax.random.fold_in(key, 99), (1, embed_dim))
    p["ln_w"] = jnp.ones((1, embed_dim), jnp.float32)
    p["ln_b"] = jnp.zeros((1, embed_dim), jnp.float32)

    blocks = []
    for d in range(depth):
        bk = jax.random.split(keys[4 + d], 8)
        blocks.append(dict(
            ln1_w=jnp.ones((1, embed_dim), jnp.float32),
            ln1_b=jnp.zeros((1, embed_dim), jnp.float32),
            qkv_wt=nrm(bk[0], (3 * embed_dim, embed_dim)).T.astype(jnp.bfloat16),
            qkv_b=nrm(bk[1], (1, 3 * embed_dim)),
            proj_wt=nrm(bk[2], (embed_dim, embed_dim)).T.astype(jnp.bfloat16),
            proj_b=nrm(bk[3], (1, embed_dim)),
            ln2_w=jnp.ones((1, embed_dim), jnp.float32),
            ln2_b=jnp.zeros((1, embed_dim), jnp.float32),
            fc1_wt=nrm(bk[4], (hidden, embed_dim)).T.astype(jnp.bfloat16),
            fc1_b=nrm(bk[5], (1, hidden)),
            fc2_wt=nrm(bk[6], (embed_dim, hidden)).T.astype(jnp.bfloat16),
            fc2_b=nrm(bk[7], (1, embed_dim)),
        ))
    p["blocks"] = blocks
    return p


# ----------------------------------------------------------------------------
# Forward (glue in plain JAX, hot paths in Pallas)
# ----------------------------------------------------------------------------

def context_encoder_forward(params, x, mask, cfg):
    P = cfg["patch_size"]
    E = cfg["embed_dim"]
    nh = cfg["num_heads"]
    vmem_limit = _vmem_limit_bytes()

    if x.ndim == 4:                       # [B, C, H, W] -> [B, 1, C, H, W]
        x = x[:, None]
        if mask is not None and mask.ndim == 3:
            mask = mask[:, None]
    B, T, C, H, W = x.shape
    gh, gw = H // P, W // P
    NP = gh * gw

    # patch extraction (glue): [B,T,C,H,W] -> [B,T,NP, C*P*P] (c, ph, pw order)
    patches = (x.reshape(B, T, C, gh, P, gw, P)
                .transpose(0, 1, 3, 5, 2, 4, 6)
                .reshape(B, T, NP, C * P * P)).astype(jnp.bfloat16)

    if mask is not None:
        # F.avg_pool2d(mask, P, P).bool(): patch masked iff any pixel masked
        pooled = mask.astype(jnp.float32).reshape(B, T, gh, P, gw, P).mean(axis=(3, 5))
        w = (pooled != 0).astype(jnp.float32).reshape(B, T, NP, 1)
    else:
        w = jnp.zeros((B, T, NP, 1), jnp.float32)

    pos = params["pos_embed"].reshape(-1, E)[:NP]           # (NP, E)
    tem = params["temporal_embed"].reshape(-1, 1, E)[:T]    # (T, 1, E)

    # fused: projection + bias + pos/temporal add + mask-token mix (bf16 tokens)
    tokens = patch_embed_pallas(patches, params["patch_wT"], params["patch_b"],
                                pos, tem, w, params["mask_token"], vmem_limit)
    tokens = tokens.reshape(B, T * NP, E)

    depth = len(params["blocks"])
    assert depth >= 1
    for d, blk in enumerate(params["blocks"]):
        q, kv = qkv_pallas(tokens, blk, nh, vmem_limit)
        tokens = attn_mlp_pallas(tokens, q, kv, blk, nh,
                                 params["ln_w"], params["ln_b"],
                                 apply_final_ln=(d == depth - 1),
                                 vmem_limit=vmem_limit)
    return tokens.astype(jnp.float32).reshape(B, T, NP, E)


# ----------------------------------------------------------------------------
# Pure-JAX fp32 reference (same params) for a loose numerical cross-check
# ----------------------------------------------------------------------------

def reference_forward(params, x, mask, cfg):
    P = cfg["patch_size"]; E = cfg["embed_dim"]; nh = cfg["num_heads"]
    B, T, C, H, W = x.shape
    gh, gw = H // P, W // P
    NP = gh * gw
    hd = E // nh

    patches = (x.reshape(B, T, C, gh, P, gw, P)
                .transpose(0, 1, 3, 5, 2, 4, 6)
                .reshape(B, T * NP, C * P * P)).astype(jnp.float32)
    tok = patches @ params["patch_wT"].astype(jnp.float32) + params["patch_b"]
    add = params["pos_embed"][:, :, :NP, :] + params["temporal_embed"][:, :T, :, :]
    tok = tok + jnp.broadcast_to(add, (1, T, NP, E)).reshape(1, T * NP, E)
    pooled = mask.astype(jnp.float32).reshape(B, T, gh, P, gw, P).mean(axis=(3, 5))
    w = (pooled != 0).astype(jnp.float32).reshape(B, T * NP, 1)
    tok = tok * (1 - w) + params["mask_token"].reshape(1, 1, E) * w

    def ln(h, wt, bs, eps=1e-5):
        mu = h.mean(-1, keepdims=True)
        var = ((h - mu) ** 2).mean(-1, keepdims=True)
        return (h - mu) * jax.lax.rsqrt(var + eps) * wt + bs

    xh = tok
    for blk in params["blocks"]:
        h = ln(xh, blk["ln1_w"], blk["ln1_b"])
        qkv = h @ blk["qkv_wt"].astype(jnp.float32) + blk["qkv_b"]
        qkv = qkv.reshape(B, -1, 3, nh, hd)
        q = qkv[:, :, 0].transpose(0, 2, 1, 3)
        k = qkv[:, :, 1].transpose(0, 2, 1, 3)
        v = qkv[:, :, 2].transpose(0, 2, 1, 3)
        s = jnp.einsum('bhqd,bhkd->bhqk', q, k) * hd ** (-0.5)
        p = jax.nn.softmax(s, axis=-1)
        o = jnp.einsum('bhqk,bhkd->bhqd', p, v).transpose(0, 2, 1, 3).reshape(B, -1, E)
        xh = xh + o @ blk["proj_wt"].astype(jnp.float32) + blk["proj_b"]
        h2 = ln(xh, blk["ln2_w"], blk["ln2_b"])
        h2 = h2 @ blk["fc1_wt"].astype(jnp.float32) + blk["fc1_b"]
        h2 = 0.5 * h2 * (1.0 + jax.lax.erf(h2 * 0.7071067811865476))
        xh = xh + h2 @ blk["fc2_wt"].astype(jnp.float32) + blk["fc2_b"]
    xh = ln(xh, params["ln_w"], params["ln_b"])
    return xh.reshape(B, T, NP, E)


# ----------------------------------------------------------------------------
# main
# ----------------------------------------------------------------------------

if __name__ == "__main__":
    # embed_dim=128 keeps the lane dimension dense (multiple of 128) on all gens.
    cfg = dict(img_size=16, patch_size=4, in_chans=3, embed_dim=128,
               depth=2, num_heads=4, mlp_ratio=4.0)

    key = jax.random.PRNGKey(0)
    params = init_params(key, **cfg)

    B, T = 2, 2
    kx, km = jax.random.split(jax.random.PRNGKey(0))
    x = jax.random.normal(kx, (B, T, cfg["in_chans"], cfg["img_size"], cfg["img_size"]),
                          dtype=jnp.float32)
    mask = (jax.random.uniform(km, (B, T, cfg["img_size"], cfg["img_size"])) > 0.5
            ).astype(jnp.float32)

    out = context_encoder_forward(params, x, mask, cfg)
    out = jax.block_until_ready(out)

    NP = (cfg["img_size"] // cfg["patch_size"]) ** 2
    assert out.shape == (B, T, NP, cfg["embed_dim"]), out.shape
    assert bool(jnp.all(jnp.isfinite(out)))

    # loose tolerance: kernel uses bf16 matmul operands / bf16 residual stream
    # between blocks + approx reciprocal in the softmax denominator
    ref = reference_forward(params, x, mask, cfg)
    max_err = float(jnp.max(jnp.abs(out - ref)))
    assert max_err < 0.25, f"max abs err vs fp32 reference: {max_err}"

    print("KERNEL_OK")
</pallas_src>

<mosaic_0001>
module attributes {stable_mosaic.version = 11 : i64} {
  func.func @_probe(%arg0: i32, %arg1: memref<8x128xf32, #tpu.memory_space<vmem>>, %arg2: memref<8x128xf32, #tpu.memory_space<vmem>>) attributes {dimension_semantics = [#tpu.dimension_semantics<arbitrary>], iteration_bounds = array<i64: 2>, scalar_prefetch = 0 : i64, scratch_operands = 0 : i64, tpu.core_type = #tpu.core_type<tc>, window_params = [{pipeline_mode = #tpu.pipeline_mode<synchronous>, transform_indices = @transform_0, window_bounds = array<i64: 8, 128>}, {pipeline_mode = #tpu.pipeline_mode<synchronous>, transform_indices = @transform_1, window_bounds = array<i64: 8, 128>}]} {
    %c0 = arith.constant 0 : index
    %c0_0 = arith.constant 0 : index
    %0 = vector.load %arg1[%c0, %c0_0] : memref<8x128xf32, #tpu.memory_space<vmem>>, vector<8x128xf32>
    %c0_1 = arith.constant 0 : index
    %c0_2 = arith.constant 0 : index
    %1 = vector.load %arg2[%c0_1, %c0_2] : memref<8x128xf32, #tpu.memory_space<vmem>>, vector<8x128xf32>
    tpu.vector_store %arg2[%c0_1, %c0_2], %0 {strides = array<i32>} : memref<8x128xf32, #tpu.memory_space<vmem>>, vector<8x128xf32>,
    return
  }
  func.func @transform_0(%arg0: i32) -> (i32, i32) {
    %c0_i32 = arith.constant 0 : i32
    %c0_i32_0 = arith.constant 0 : i32
    %c0_i32_1 = arith.constant 0 : i32
    return %c0_i32, %c0_i32_0 : i32, i32
  }
  func.func @transform_1(%arg0: i32) -> (i32, i32) {
    %c0_i32 = arith.constant 0 : i32
    %c0_i32_0 = arith.constant 0 : i32
    %c0_i32_1 = arith.constant 0 : i32
    return %c0_i32, %c0_i32_0 : i32, i32
  }
}

module attributes {stable_mosaic.version = 11 : i64} {
  func.func @_patch_embed_kernel(%arg0: i32, %arg1: i32, %arg2: i32, %arg3: memref<1x1x16x48xbf16, #tpu.memory_space<vmem>>, %arg4: memref<48x128xbf16, #tpu.memory_space<vmem>>, %arg5: memref<1x128xf32, #tpu.memory_space<vmem>>, %arg6: memref<16x128xf32, #tpu.memory_space<vmem>>, %arg7: memref<1x1x128xf32, #tpu.memory_space<vmem>>, %arg8: memref<1x1x16x1xf32, #tpu.memory_space<vmem>>, %arg9: memref<1x128xf32, #tpu.memory_space<vmem>>, %arg10: memref<1x1x16x128xbf16, #tpu.memory_space<vmem>>) attributes {dimension_semantics = [#tpu.dimension_semantics<parallel>, #tpu.dimension_semantics<parallel>, #tpu.dimension_semantics<parallel>], iteration_bounds = array<i64: 2, 2, 1>, scalar_prefetch = 0 : i64, scratch_operands = 0 : i64, tpu.core_type = #tpu.core_type<tc>, window_params = [{transform_indices = @transform_0, window_bounds = array<i64: 1, 1, 16, 48>}, {pipeline_mode = #tpu.pipeline_mode<synchronous>, transform_indices = @transform_1, window_bounds = array<i64: 48, 128>}, {pipeline_mode = #tpu.pipeline_mode<synchronous>, transform_indices = @transform_2, window_bounds = array<i64: 1, 128>}, {transform_indices = @transform_3, window_bounds = array<i64: 16, 128>}, {transform_indices = @transform_4, window_bounds = array<i64: 1, 1, 128>}, {transform_indices = @transform_5, window_bounds = array<i64: 1, 1, 16, 1>}, {pipeline_mode = #tpu.pipeline_mode<synchronous>, transform_indices = @transform_6, window_bounds = array<i64: 1, 128>}, {transform_indices = @transform_7, window_bounds = array<i64: 1, 1, 16, 128>}]} {
    %c0 = arith.constant 0 : index
    %c0_0 = arith.constant 0 : index
    %c0_1 = arith.constant 0 : index
    %c0_2 = arith.constant 0 : index
    %0 = vector.load %arg3[%c0, %c0_0, %c0_1, %c0_2] : memref<1x1x16x48xbf16, #tpu.memory_space<vmem>>, vector<1x1x16x48xbf16>
    %1 = vector.shape_cast %0 : vector<1x1x16x48xbf16> to vector<16x48xbf16>
    %c0_3 = arith.constant 0 : index
    %c0_4 = arith.constant 0 : index
    %2 = vector.load %arg4[%c0_3, %c0_4] : memref<48x128xbf16, #tpu.memory_space<vmem>>, vector<48x128xbf16>
    %cst = arith.constant dense<0.000000e+00> : vector<16x128xf32>
    %3 = tpu.matmul %1, %2, %cst {dimension_numbers = #tpu.dot_dimension_numbers<[1], [0], [0], [1], [0, 0, 1, 1], [], []>} : vector<16x48xbf16>, vector<48x128xbf16>, vector<16x128xf32> -> vector<16x128xf32>
    %c0_5 = arith.constant 0 : index
    %c0_6 = arith.constant 0 : index
    %4 = vector.load %arg5[%c0_5, %c0_6] : memref<1x128xf32, #tpu.memory_space<vmem>>, vector<1x128xf32>
    %5 = vector.broadcast %4 : vector<1x128xf32> to vector<16x128xf32>
    %6 = arith.addf %3, %5 : vector<16x128xf32>
    %c0_7 = arith.constant 0 : index
    %c0_8 = arith.constant 0 : index
    %7 = vector.load %arg6[%c0_7, %c0_8] : memref<16x128xf32, #tpu.memory_space<vmem>>, vector<16x128xf32>
    %8 = arith.addf %6, %7 : vector<16x128xf32>
    %c0_9 = arith.constant 0 : index
    %c0_10 = arith.constant 0 : index
    %c0_11 = arith.constant 0 : index
    %9 = vector.load %arg7[%c0_9, %c0_10, %c0_11] : memref<1x1x128xf32, #tpu.memory_space<vmem>>, vector<1x1x128xf32>
    %10 = vector.shape_cast %9 : vector<1x1x128xf32> to vector<1x128xf32>
    %11 = vector.broadcast %10 : vector<1x128xf32> to vector<16x128xf32>
    %12 = arith.addf %8, %11 : vector<16x128xf32>
    %c0_12 = arith.constant 0 : index
    %c0_13 = arith.constant 0 : index
    %c0_14 = arith.constant 0 : index
    %c0_15 = arith.constant 0 : index
    %13 = vector.load %arg8[%c0_12, %c0_13, %c0_14, %c0_15] : memref<1x1x16x1xf32, #tpu.memory_space<vmem>>, vector<1x1x16x1xf32>
    %14 = vector.shape_cast %13 : vector<1x1x16x1xf32> to vector<16x1xf32>
    %cst_16 = arith.constant 1.000000e+00 : f32
    %15 = vector.broadcast %cst_16 : f32 to vector<16x1xf32>
    %16 = arith.subf %15, %14 : vector<16x1xf32>
    %17 = vector.broadcast %16 : vector<16x1xf32> to vector<16x128xf32>
    %18 = arith.mulf %12, %17 : vector<16x128xf32>
    %c0_17 = arith.constant 0 : index
    %c0_18 = arith.constant 0 : index
    %19 = vector.load %arg9[%c0_17, %c0_18] : memref<1x128xf32, #tpu.memory_space<vmem>>, vector<1x128xf32>
    %20 = vector.broadcast %19 : vector<1x128xf32> to vector<16x128xf32>
    %21 = vector.broadcast %14 : vector<16x1xf32> to vector<16x128xf32>
    %22 = arith.mulf %20, %21 : vector<16x128xf32>
    %23 = arith.addf %18, %22 : vector<16x128xf32>
    %24 = arith.truncf %23 : vector<16x128xf32> to vector<16x128xbf16>
    %c0_19 = arith.constant 0 : index
    %c0_20 = arith.constant 0 : index
    %c0_21 = arith.constant 0 : index
    %c0_22 = arith.constant 0 : index
    %25 = vector.load %arg10[%c0_19, %c0_20, %c0_21, %c0_22] : memref<1x1x16x128xbf16, #tpu.memory_space<vmem>>, vector<1x1x16x128xbf16>
    %26 = vector.shape_cast %25 : vector<1x1x16x128xbf16> to vector<16x128xbf16>
    %27 = vector.shape_cast %24 : vector<16x128xbf16> to vector<1x1x16x128xbf16>
    tpu.vector_store %arg10[%c0_19, %c0_20, %c0_21, %c0_22], %27 {strides = array<i32>} : memref<1x1x16x128xbf16, #tpu.memory_space<vmem>>, vector<1x1x16x128xbf16>,
    return
  }
  func.func @transform_0(%arg0: i32, %arg1: i32, %arg2: i32) -> (i32, i32, i32, i32) {
    %c0_i32 = arith.constant 0 : i32
    %c0_i32_0 = arith.constant 0 : i32
    return %arg0, %arg1, %arg2, %c0_i32 : i32, i32, i32, i32
  }
  func.func @transform_1(%arg0: i32, %arg1: i32, %arg2: i32) -> (i32, i32) {
    %c0_i32 = arith.constant 0 : i32
    %c0_i32_0 = arith.constant 0 : i32
    %c0_i32_1 = arith.constant 0 : i32
    return %c0_i32, %c0_i32_0 : i32, i32
  }
  func.func @transform_2(%arg0: i32, %arg1: i32, %arg2: i32) -> (i32, i32) {
    %c0_i32 = arith.constant 0 : i32
    %c0_i32_0 = arith.constant 0 : i32
    %c0_i32_1 = arith.constant 0 : i32
    return %c0_i32, %c0_i32_0 : i32, i32
  }
  func.func @transform_3(%arg0: i32, %arg1: i32, %arg2: i32) -> (i32, i32) {
    %c0_i32 = arith.constant 0 : i32
    %c0_i32_0 = arith.constant 0 : i32
    return %arg2, %c0_i32 : i32, i32
  }
  func.func @transform_4(%arg0: i32, %arg1: i32, %arg2: i32) -> (i32, i32, i32) {
    %c0_i32 = arith.constant 0 : i32
    %c0_i32_0 = arith.constant 0 : i32
    %c0_i32_1 = arith.constant 0 : i32
    return %arg1, %c0_i32, %c0_i32_0 : i32, i32, i32
  }
  func.func @transform_5(%arg0: i32, %arg1: i32, %arg2: i32) -> (i32, i32, i32, i32) {
    %c0_i32 = arith.constant 0 : i32
    %c0_i32_0 = arith.constant 0 : i32
    return %arg0, %arg1, %arg2, %c0_i32 : i32, i32, i32, i32
  }
  func.func @transform_6(%arg0: i32, %arg1: i32, %arg2: i32) -> (i32, i32) {
    %c0_i32 = arith.constant 0 : i32
    %c0_i32_0 = arith.constant 0 : i32
    %c0_i32_1 = arith.constant 0 : i32
    return %c0_i32, %c0_i32_0 : i32, i32
  }
  func.func @transform_7(%arg0: i32, %arg1: i32, %arg2: i32) -> (i32, i32, i32, i32) {
    %c0_i32 = arith.constant 0 : i32
    %c0_i32_0 = arith.constant 0 : i32
    return %arg0, %arg1, %arg2, %c0_i32 : i32, i32, i32, i32
  }
}

</mosaic_0001>

<llo_original>
// kernel: tpu_custom_call.1
$region0: #{tpu_custom_call.1}
  #allocation0 [shape = 'u32[]', space=smem, size = 0x4, offset = 0x4, fixed_abs, tag = 'smem constant byte address 0x4 - core index']
  #allocation1 [shape = 'u32[144,128]{1,0:T(1,128)}', space=vmem, size = 0x12000, scoped, tag = 'internal scratch']
  %s0 = inlined_call_operand.hbm [shape: f32[8,128], index: 0, kind: input, shape index: {}]
  %s1 = inlined_call_operand.hbm [shape: f32[8,128], index: 1, kind: output, shape index: {}]
  %s2 = sld [smem:[#allocation0]]
  $region41: #{tpu_custom_call.1} parent=0
    _
  %s4 = ssub.s32 1, %s2
  %s5 = scalar_select 0, %s4, %s2
  $region1: #{tpu_custom_call.1} parent=0
    #allocation2 [shape = 'u8[4096]{0}', space=vmem, size = 0x1000, scoped, tag = 'input window, operand 0, single buffered']
    #allocation3 [shape = 's32[2]{0}', space=sflag, size = 0x8, scoped, tag = 'scoped memory for tpu_custom_call.1']
    #allocation4 [shape = 's32[2]{0}', space=sflag, size = 0x8, scoped, tag = 'scoped memory for tpu_custom_call.1']
    #allocation5 [shape = 'u8[4096]{0}', space=vmem, size = 0x1000, scoped, tag = 'output window, operand 0, single buffered']
    %6 = vsyncpa [#allocation3], 0
    %7 = vsyncpa [#allocation4], 0
    loop: start=0, step=1, limit=4
    $region2: #{tpu_custom_call.1} parent=1 // loop_pre_header
      _
    $region3: #{tpu_custom_call.1} parent=1 // loop_header
      %s9 = sphi 0, %s13
      %p10 = scmp.ge.s32.totalorder %s9, 4
      %s17 = sphi 0, %s17
      %s19 = sphi 0, %s17
      %s20 = sphi 0, %s19
      %s34 = sphi 0, %s20
      %s38 = sphi 0, %s38
      %s40 = sphi 0, %s38
      %s41 = sphi 0, %s40
      %s55 = sphi 0, %s41
    $region4: #{tpu_custom_call.1} parent=1 // loop_header_branch
      %12 = sbr.rel (%p10) target = $region8
    $region5: #{tpu_custom_call.1} parent=1 // loop_body
      %s14 = ssub.s32 %s9, 1
      %s15 = ssub.s32 %s9, 2
      %s16 = sadd.s32 %s9, 1
      %s18 = sadd.s32 %s17, 1
      %p21 = scmp.eq.s32.totalorder %s9, 1
      %p22 = scmp.ne.s32.totalorder %s17, %s19
      %p23 = scmp.eq.s32.totalorder %s9, 0
      %p24 = por %p22, %p23
      %p25 = scmp.ne.s32.totalorder %s17, %s19
      %p26 = scmp.eq.s32.totalorder %s14, 1
      %p27 = por %p25, %p26
      %p28 = scmp.ne.s32.totalorder %s19, %s20
      %p29 = scmp.eq.s32.totalorder %s14, 0
      %p30 = por %p28, %p29
      %p31 = scmp.ne.s32.totalorder %s19, %s20
      %p32 = scmp.eq.s32.totalorder %s15, 1
      %p33 = por %p31, %p32
      %p35 = scmp.ne.s32.totalorder %s20, %s34
      %p36 = scmp.eq.s32.totalorder %s15, 0
      %p37 = por %p35, %p36
      %s39 = sadd.s32 %s38, 1
      %p42 = scmp.eq.s32.totalorder %s9, 1
      %p43 = scmp.ne.s32.totalorder %s38, %s40
      %p44 = scmp.eq.s32.totalorder %s9, 0
      %p45 = por %p43, %p44
      %p46 = scmp.ne.s32.totalorder %s38, %s40
      %p47 = scmp.eq.s32.totalorder %s14, 1
      %p48 = por %p46, %p47
      %p49 = scmp.ne.s32.totalorder %s40, %s41
      %p50 = scmp.eq.s32.totalorder %s14, 0
      %p51 = por %p49, %p50
      %p52 = scmp.ne.s32.totalorder %s40, %s41
      %p53 = scmp.eq.s32.totalorder %s15, 1
      %p54 = por %p52, %p53
      %p56 = scmp.ne.s32.totalorder %s41, %s55
      %p57 = scmp.eq.s32.totalorder %s15, 0
      %p58 = por %p56, %p57
      %p59 = scmp.le.s32.totalorder 1, %s9
      %p60 = scmp.lt.s32.totalorder %s9, 3
      %p61 = pnand %p59, %p60
      %p62 = pneg %p61
      // Predicated region
      $region9: #{tpu_custom_call.1} parent=5 // pred_check
        _
      $region10: #{tpu_custom_call.1} parent=5 // pred_check_branch
        %64 = sbr.rel (%p61) target = $region12
      $region11: #{tpu_custom_call.1} parent=5 // pred_region
        %s65 = ssub.s32 %s9, 1
        // Predicated region
        $region13: #{tpu_custom_call.1} parent=11 // pred_check
          %p66 = pneg %p30
        $region14: #{tpu_custom_call.1} parent=11 // pred_check_branch
          %68 = sbr.rel (%p66) target = $region16
        $region15: #{tpu_custom_call.1} parent=11 // pred_region
          %s70 = ssub.s32 128, 128
          %71 = vsyncadd [#allocation3], %s70
          %s73 = sshll.u32 [#allocation2], 4
          %s74 = int_to_ptr.vmem [resolvable:$true] %s73
          %76 = dma.hbm_to_vmem [thread:$0]  %s0, 128, %s74, [#allocation3]
        $region16: #{tpu_custom_call.1} parent=11 // pred_fallthru
          _
      $region12: #{tpu_custom_call.1} parent=5 // pred_fallthru
        _
      %p77 = scmp.lt.s32.totalorder %s9, 2
      // Predicated region
      $region17: #{tpu_custom_call.1} parent=5 // pred_check
        %p78 = pneg %p77
      $region18: #{tpu_custom_call.1} parent=5 // pred_check_branch
        %80 = sbr.rel (%p78) target = $region20
      $region19: #{tpu_custom_call.1} parent=5 // pred_region
        _
      $region20: #{tpu_custom_call.1} parent=5 // pred_fallthru
        _
      %p81 = scmp.le.s32.totalorder 1, %s9
      %p82 = scmp.lt.s32.totalorder %s9, 3
      %p83 = pnand %p81, %p82
      %p84 = pneg %p83
      // Predicated region
      $region21: #{tpu_custom_call.1} parent=5 // pred_check
        _
      $region22: #{tpu_custom_call.1} parent=5 // pred_check_branch
        %86 = sbr.rel (%p83) target = $region24
      $region23: #{tpu_custom_call.1} parent=5 // pred_region
        %s87 = ssub.s32 %s9, 1
        // Predicated region
        $region25: #{tpu_custom_call.1} parent=23 // pred_check
          %p88 = pneg %p30
        $region26: #{tpu_custom_call.1} parent=23 // pred_check_branch
          %90 = sbr.rel (%p88) target = $region28
        $region27: #{tpu_custom_call.1} parent=23 // pred_region
          %91 = dma.done [#allocation3], 128
        $region28: #{tpu_custom_call.1} parent=23 // pred_fallthru
          _
        %p92 = pneg %p30
        %p93 = pneg %p27
        %p94 = pneg %p51
        %p95 = pneg %p48
        %v96 = vld [vmem:[#allocation2] sm:$0xff]
        %97 = vst [vmem:[#allocation5] sm:$0xff] %v96
        // Predicated region
        $region29: #{tpu_custom_call.1} parent=23 // pred_check
          %p98 = pneg %p48
        $region30: #{tpu_custom_call.1} parent=23 // pred_check_branch
          %100 = sbr.rel (%p98) target = $region32
        $region31: #{tpu_custom_call.1} parent=23 // pred_region
          %s102 = ssub.s32 128, 128
          %103 = vsyncadd [#allocation4], %s102
          %s105 = sshll.u32 [#allocation5], 4
          %s106 = int_to_ptr.vmem [resolvable:$true] %s105
          %108 = dma.vmem_to_hbm [thread:$0]  %s106, 128, %s1, [#allocation4]
        $region32: #{tpu_custom_call.1} parent=23 // pred_fallthru
          _
        // Predicated region
        $region33: #{tpu_custom_call.1} parent=23 // pred_check
          %p109 = pneg %p48
        $region34: #{tpu_custom_call.1} parent=23 // pred_check_branch
          %111 = sbr.rel (%p109) target = $region36
        $region35: #{tpu_custom_call.1} parent=23 // pred_region
          %112 = dma.done [#allocation4], 128
        $region36: #{tpu_custom_call.1} parent=23 // pred_fallthru
          _
      $region24: #{tpu_custom_call.1} parent=5 // pred_fallthru
        _
      %p113 = scmp.le.s32.totalorder 2, %s9
      // Predicated region
      $region37: #{tpu_custom_call.1} parent=5 // pred_check
        %p114 = pneg %p113
      $region38: #{tpu_custom_call.1} parent=5 // pred_check_branch
        %116 = sbr.rel (%p114) target = $region40
      $region39: #{tpu_custom_call.1} parent=5 // pred_region
        %s117 = ssub.s32 %s9, 2
      $region40: #{tpu_custom_call.1} parent=5 // pred_fallthru
        _
    $region6: #{tpu_custom_call.1} parent=1 // loop_footer
      %s13 = sadd.s32 1, %s9
    $region7: #{tpu_custom_call.1} parent=1 // loop_footer_branch
      %8 = sbr.rel target = $region3
    $region8: #{tpu_custom_call.1} parent=1 // loop_exit
      _
    %118 = vsyncpa [#allocation3], 1
    %s119 = scalar_lea.sflag [#allocation3], 1
    %120 = vsyncpa %s119, 1
    %121 = vsyncpa [#allocation4], 1
    %s122 = scalar_lea.sflag [#allocation4], 1
    %123 = vsyncpa %s122, 1

// kernel: tpu_custom_call.1
$region0: #{tpu_custom_call.1}
  #allocation0 [shape = 'u32[]', space=smem, size = 0x4, offset = 0x4, fixed_abs, tag = 'smem constant byte address 0x4 - core index']
  #allocation1 [shape = 'u32[144,128]{1,0:T(1,128)}', space=vmem, size = 0x12000, scoped, tag = 'internal scratch']
  %s0 = inlined_call_operand.vmem [shape: bf16[2,2,16,48], index: 0, kind: input, shape index: {}]
  %s1 = inlined_call_operand.vmem [shape: bf16[48,128], index: 1, kind: input, shape index: {}]
  %s2 = inlined_call_operand.vmem [shape: f32[1,128], index: 2, kind: input, shape index: {}]
  %s3 = inlined_call_operand.vmem [shape: f32[16,128], index: 3, kind: input, shape index: {}]
  %s4 = inlined_call_operand.vmem [shape: f32[2,1,128], index: 4, kind: input, shape index: {}]
  %s5 = inlined_call_operand.vmem [shape: f32[2,2,16,1], index: 5, kind: input, shape index: {}]
  %s6 = inlined_call_operand.vmem [shape: f32[1,128], index: 6, kind: input, shape index: {}]
  %s7 = inlined_call_operand.hbm [shape: bf16[2,2,16,128], index: 7, kind: output, shape index: {}]
  %s8 = sld [smem:[#allocation0]]
  $region61: #{tpu_custom_call.1} parent=0
    _
  %s10 = ssub.s32 1, %s8
  %s11 = scalar_select 0, %s10, %s8
  $region1: #{tpu_custom_call.1} parent=0
    #allocation2 [shape = 'u8[8192]{0}', space=vmem, size = 0x2000, scoped, tag = 'output window, operand 0']
    #allocation3 [shape = 's32[2]{0}', space=sflag, size = 0x8, scoped, tag = 'scoped memory for tpu_custom_call.1']
    %12 = vsyncpa [#allocation3], 0
    %s13 = scalar_lea.sflag [#allocation3], 1
    %14 = vsyncpa %s13, 0
    loop: start=0, step=1, limit=6
    $region2: #{tpu_custom_call.1} parent=1 // loop_pre_header
      _
    $region3: #{tpu_custom_call.1} parent=1 // loop_header
      %s16 = sphi 0, %s20
      %p17 = scmp.ge.s32.totalorder %s16, 6
      %s23 = sphi 0, %s42
      %s24 = sphi 0, %s38
      %s25 = sphi 0, %s34
      %s26 = sphi 0, %s23
      %s27 = sphi 0, %s24
      %s28 = sphi 0, %s25
      %s29 = sphi 0, %s26
      %s30 = sphi 0, %s27
      %s31 = sphi 0, %s28
      %s49 = sphi 0, %s51
      %s52 = sphi 0, %s49
      %s53 = sphi 0, %s52
      %s69 = sphi 0, %s53
      %s73 = sphi 0, %s73
      %s75 = sphi 0, %s73
      %s76 = sphi 0, %s75
      %s90 = sphi 0, %s76
      %s94 = sphi 0, %s94
      %s96 = sphi 0, %s94
      %s97 = sphi 0, %s96
      %s111 = sphi 0, %s97
      %s117 = sphi 0, %s119
      %s120 = sphi 0, %s117
      %s121 = sphi 0, %s120
      %s137 = sphi 0, %s121
      %s143 = sphi 0, %s145
      %s146 = sphi 0, %s143
      %s147 = sphi 0, %s146
      %s163 = sphi 0, %s147
      %s173 = sphi 0, %s175
      %s176 = sphi 0, %s173
      %s177 = sphi 0, %s176
      %s193 = sphi 0, %s177
      %s197 = sphi 0, %s197
      %s199 = sphi 0, %s197
      %s200 = sphi 0, %s199
      %s214 = sphi 0, %s200
      %s224 = sphi 0, %s226
      %s227 = sphi 0, %s224
      %s228 = sphi 0, %s227
      %s244 = sphi 0, %s228
    $region4: #{tpu_custom_call.1} parent=1 // loop_header_branch
      %19 = sbr.rel (%p17) target = $region8
    $region5: #{tpu_custom_call.1} parent=1 // loop_body
      %s21 = ssub.s32 %s16, 1
      %s22 = ssub.s32 %s16, 2
      %s32 = sadd.s32 1, %s25
      %p33 = scmp.ge.s32.totalorder %s32, 1
      %s34 = scalar_select %p33, 0, %s32
      %s35 = sadd.s32 1, %s24
      %s36 = scalar_select %p33, %s35, %s24
      %p37 = scmp.ge.s32.totalorder %s36, 2
      %s38 = scalar_select %p37, 0, %s36
      %s39 = sadd.s32 1, %s23
      %s40 = scalar_select %p37, %s39, %s23
      %p41 = scmp.ge.s32.totalorder %s40, 2
      %s42 = scalar_select %p41, 0, %s40
      %s43 = ssub.s32 %s23, %s42
      %s44 = ssub.s32 %s24, %s38
      %s45 = sor.u32 %s43, %s44
      %s46 = ssub.s32 %s25, %s34
      %s47 = sor.u32 %s45, %s46
      %p48 = scmp.eq.s32.totalorder %s47, 0
      %s50 = sadd.s32 %s49, 1
      %s51 = scalar_select %p48, %s49, %s50
      %p54 = pneg %p48
      %p55 = scmp.eq.s32.totalorder %s16, 3
      %p56 = por %p54, %p55
      %p57 = scmp.ne.s32.totalorder %s49, %s52
      %p58 = scmp.eq.s32.totalorder %s16, 0
      %p59 = por %p57, %p58
      %p60 = scmp.ne.s32.totalorder %s49, %s52
      %p61 = scmp.eq.s32.totalorder %s21, 3
      %p62 = por %p60, %p61
      %p63 = scmp.ne.s32.totalorder %s52, %s53
      %p64 = scmp.eq.s32.totalorder %s21, 0
      %p65 = por %p63, %p64
      %p66 = scmp.ne.s32.totalorder %s52, %s53
      %p67 = scmp.eq.s32.totalorder %s22, 3
      %p68 = por %p66, %p67
      %p70 = scmp.ne.s32.totalorder %s53, %s69
      %p71 = scmp.eq.s32.totalorder %s22, 0
      %p72 = por %p70, %p71
      %s74 = sadd.s32 %s73, 1
      %p77 = scmp.eq.s32.totalorder %s16, 3
      %p78 = scmp.ne.s32.totalorder %s73, %s75
      %p79 = scmp.eq.s32.totalorder %s16, 0
      %p80 = por %p78, %p79
      %p81 = scmp.ne.s32.totalorder %s73, %s75
      %p82 = scmp.eq.s32.totalorder %s21, 3
      %p83 = por %p81, %p82
      %p84 = scmp.ne.s32.totalorder %s75, %s76
      %p85 = scmp.eq.s32.totalorder %s21, 0
      %p86 = por %p84, %p85
      %p87 = scmp.ne.s32.totalorder %s75, %s76
      %p88 = scmp.eq.s32.totalorder %s22, 3
      %p89 = por %p87, %p88
      %p91 = scmp.ne.s32.totalorder %s76, %s90
      %p92 = scmp.eq.s32.totalorder %s22, 0
      %p93 = por %p91, %p92
      %s95 = sadd.s32 %s94, 1
      %p98 = scmp.eq.s32.totalorder %s16, 3
      %p99 = scmp.ne.s32.totalorder %s94, %s96
      %p100 = scmp.eq.s32.totalorder %s16, 0
      %p101 = por %p99, %p100
      %p102 = scmp.ne.s32.totalorder %s94, %s96
      %p103 = scmp.eq.s32.totalorder %s21, 3
      %p104 = por %p102, %p103
      %p105 = scmp.ne.s32.totalorder %s96, %s97
      %p106 = scmp.eq.s32.totalorder %s21, 0
      %p107 = por %p105, %p106
      %p108 = scmp.ne.s32.totalorder %s96, %s97
      %p109 = scmp.eq.s32.totalorder %s22, 3
      %p110 = por %p108, %p109
      %p112 = scmp.ne.s32.totalorder %s97, %s111
      %p113 = scmp.eq.s32.totalorder %s22, 0
      %p114 = por %p112, %p113
      %s115 = ssub.s32 %s25, %s34
      %p116 = scmp.eq.s32.totalorder %s115, 0
      %s118 = sadd.s32 %s117, 1
      %s119 = scalar_select %p116, %s117, %s118
      %p122 = pneg %p116
      %p123 = scmp.eq.s32.totalorder %s16, 3
      %p124 = por %p122, %p123
      %p125 = scmp.ne.s32.totalorder %s117, %s120
      %p126 = scmp.eq.s32.totalorder %s16, 0
      %p127 = por %p125, %p126
      %p128 = scmp.ne.s32.totalorder %s117, %s120
      %p129 = scmp.eq.s32.totalorder %s21, 3
      %p130 = por %p128, %p129
      %p131 = scmp.ne.s32.totalorder %s120, %s121
      %p132 = scmp.eq.s32.totalorder %s21, 0
      %p133 = por %p131, %p132
      %p134 = scmp.ne.s32.totalorder %s120, %s121
      %p135 = scmp.eq.s32.totalorder %s22, 3
      %p136 = por %p134, %p135
      %p138 = scmp.ne.s32.totalorder %s121, %s137
      %p139 = scmp.eq.s32.totalorder %s22, 0
      %p140 = por %p138, %p139
      %s141 = ssub.s32 %s24, %s38
      %p142 = scmp.eq.s32.totalorder %s141, 0
      %s144 = sadd.s32 %s143, 1
      %s145 = scalar_select %p142, %s143, %s144
      %p148 = pneg %p142
      %p149 = scmp.eq.s32.totalorder %s16, 3
      %p150 = por %p148, %p149
      %p151 = scmp.ne.s32.totalorder %s143, %s146
      %p152 = scmp.eq.s32.totalorder %s16, 0
      %p153 = por %p151, %p152
      %p154 = scmp.ne.s32.totalorder %s143, %s146
      %p155 = scmp.eq.s32.totalorder %s21, 3
      %p156 = por %p154, %p155
      %p157 = scmp.ne.s32.totalorder %s146, %s147
      %p158 = scmp.eq.s32.totalorder %s21, 0
      %p159 = por %p157, %p158
      %p160 = scmp.ne.s32.totalorder %s146, %s147
      %p161 = scmp.eq.s32.totalorder %s22, 3
      %p162 = por %p160, %p161
      %p164 = scmp.ne.s32.totalorder %s147, %s163
      %p165 = scmp.eq.s32.totalorder %s22, 0
      %p166 = por %p164, %p165
      %s167 = ssub.s32 %s23, %s42
      %s168 = ssub.s32 %s24, %s38
      %s169 = sor.u32 %s167, %s168
      %s170 = ssub.s32 %s25, %s34
      %s171 = sor.u32 %s169, %s170
      %p172 = scmp.eq.s32.totalorder %s171, 0
      %s174 = sadd.s32 %s173, 1
      %s175 = scalar_select %p172, %s173, %s174
      %p178 = pneg %p172
      %p179 = scmp.eq.s32.totalorder %s16, 3
      %p180 = por %p178, %p179
      %p181 = scmp.ne.s32.totalorder %s173, %s176
      %p182 = scmp.eq.s32.totalorder %s16, 0
      %p183 = por %p181, %p182
      %p184 = scmp.ne.s32.totalorder %s173, %s176
      %p185 = scmp.eq.s32.totalorder %s21, 3
      %p186 = por %p184, %p185
      %p187 = scmp.ne.s32.totalorder %s176, %s177
      %p188 = scmp.eq.s32.totalorder %s21, 0
      %p189 = por %p187, %p188
      %p190 = scmp.ne.s32.totalorder %s176, %s177
      %p191 = scmp.eq.s32.totalorder %s22, 3
      %p192 = por %p190, %p191
      %p194 = scmp.ne.s32.totalorder %s177, %s193
      %p195 = scmp.eq.s32.totalorder %s22, 0
      %p196 = por %p194, %p195
      %s198 = sadd.s32 %s197, 1
      %p201 = scmp.eq.s32.totalorder %s16, 3
      %p202 = scmp.ne.s32.totalorder %s197, %s199
      %p203 = scmp.eq.s32.totalorder %s16, 0
      %p204 = por %p202, %p203
      %p205 = scmp.ne.s32.totalorder %s197, %s199
      %p206 = scmp.eq.s32.totalorder %s21, 3
      %p207 = por %p205, %p206
      %p208 = scmp.ne.s32.totalorder %s199, %s200
      %p209 = scmp.eq.s32.totalorder %s21, 0
      %p210 = por %p208, %p209
      %p211 = scmp.ne.s32.totalorder %s199, %s200
      %p212 = scmp.eq.s32.totalorder %s22, 3
      %p213 = por %p211, %p212
      %p215 = scmp.ne.s32.totalorder %s200, %s214
      %p216 = scmp.eq.s32.totalorder %s22, 0
      %p217 = por %p215, %p216
      %s218 = ssub.s32 %s23, %s42
      %s219 = ssub.s32 %s24, %s38
      %s220 = sor.u32 %s218, %s219
      %s221 = ssub.s32 %s25, %s34
      %s222 = sor.u32 %s220, %s221
      %p223 = scmp.eq.s32.totalorder %s222, 0
      %s225 = sadd.s32 %s224, 1
      %s226 = scalar_select %p223, %s224, %s225
      %p229 = pneg %p223
      %p230 = scmp.eq.s32.totalorder %s16, 3
      %p231 = por %p229, %p230
      %p232 = scmp.ne.s32.totalorder %s224, %s227
      %p233 = scmp.eq.s32.totalorder %s16, 0
      %p234 = por %p232, %p233
      %p235 = scmp.ne.s32.totalorder %s224, %s227
      %p236 = scmp.eq.s32.totalorder %s21, 3
      %p237 = por %p235, %p236
      %p238 = scmp.ne.s32.totalorder %s227, %s228
      %p239 = scmp.eq.s32.totalorder %s21, 0
      %p240 = por %p238, %p239
      %p241 = scmp.ne.s32.totalorder %s227, %s228
      %p242 = scmp.eq.s32.totalorder %s22, 3
      %p243 = por %p241, %p242
      %p245 = scmp.ne.s32.totalorder %s228, %s244
      %p246 = scmp.eq.s32.totalorder %s22, 0
      %p247 = por %p245, %p246
      %p248 = scmp.le.s32.totalorder 1, %s16
      %p249 = scmp.lt.s32.totalorder %s16, 5
      %p250 = pnand %p248, %p249
      %p251 = pneg %p250
      // Predicated region
      $region9: #{tpu_custom_call.1} parent=5 // pred_check
        _
      $region10: #{tpu_custom_call.1} parent=5 // pred_check_branch
        %253 = sbr.rel (%p250) target = $region12
      $region11: #{tpu_custom_call.1} parent=5 // pred_region
        %s254 = ssub.s32 %s16, 1
        // Predicated region
        $region13: #{tpu_custom_call.1} parent=11 // pred_check
          %p255 = pneg %p86
        $region14: #{tpu_custom_call.1} parent=11 // pred_check_branch
          %257 = sbr.rel (%p255) target = $region16
        $region15: #{tpu_custom_call.1} parent=11 // pred_region
          _
        $region16: #{tpu_custom_call.1} parent=11 // pred_fallthru
          _
        // Predicated region
        $region17: #{tpu_custom_call.1} parent=11 // pred_check
          %p258 = pneg %p107
        $region18: #{tpu_custom_call.1} parent=11 // pred_check_branch
          %260 = sbr.rel (%p258) target = $region20
        $region19: #{tpu_custom_call.1} parent=11 // pred_region
          _
        $region20: #{tpu_custom_call.1} parent=11 // pred_fallthru
          _
        // Predicated region
        $region21: #{tpu_custom_call.1} parent=11 // pred_check
          %p261 = pneg %p133
        $region22: #{tpu_custom_call.1} parent=11 // pred_check_branch
          %263 = sbr.rel (%p261) target = $region24
        $region23: #{tpu_custom_call.1} parent=11 // pred_region
          %s264 = smul.u32 2, %s28
          %p265 = scmp.lt.s32.totalorder %s264, 1
          %s266 = scalar_select %p265, %s264, 1
          %s267 = smul.addr %s266, 8
          %s268 = scalar_lea.vmem %s3, %s267
          %s269 = smul.u32 2, %s28
        $region24: #{tpu_custom_call.1} parent=11 // pred_fallthru
          _
        // Predicated region
        $region25: #{tpu_custom_call.1} parent=11 // pred_check
          %p270 = pneg %p210
        $region26: #{tpu_custom_call.1} parent=11 // pred_check_branch
          %272 = sbr.rel (%p270) target = $region28
        $region27: #{tpu_custom_call.1} parent=11 // pred_region
          _
        $region28: #{tpu_custom_call.1} parent=11 // pred_fallthru
          _
      $region12: #{tpu_custom_call.1} parent=5 // pred_fallthru
        _
      %p273 = scmp.lt.s32.totalorder %s16, 4
      // Predicated region
      $region29: #{tpu_custom_call.1} parent=5 // pred_check
        %p274 = pneg %p273
      $region30: #{tpu_custom_call.1} parent=5 // pred_check_branch
        %276 = sbr.rel (%p274) target = $region32
      $region31: #{tpu_custom_call.1} parent=5 // pred_region
        // Predicated region
        $region33: #{tpu_custom_call.1} parent=31 // pred_check
          %p277 = pneg %p59
        $region34: #{tpu_custom_call.1} parent=31 // pred_check_branch
          %279 = sbr.rel (%p277) target = $region36
        $region35: #{tpu_custom_call.1} parent=31 // pred_region
          %s280 = smul.u32 2, %s25
          %p281 = scmp.lt.s32.totalorder %s23, 1
          %s282 = scalar_select %p281, %s23, 1
          %p283 = scmp.lt.s32.totalorder %s24, 1
          %s284 = scalar_select %p283, %s24, 1
          %p285 = scmp.lt.s32.totalorder %s280, 1
          %s286 = scalar_select %p285, %s280, 1
          %s287 = smul.addr %s284, 2
          %s288 = sadd.s32 %s286, %s287
          %s289 = smul.addr %s282, 4
          %s290 = sadd.s32 %s288, %s289
          %s291 = smul.addr %s290, 4
          %s292 = scalar_lea.vmem %s0, %s291
          %s293 = smul.u32 2, %s25
        $region36: #{tpu_custom_call.1} parent=31 // pred_fallthru
          _
        // Predicated region
        $region37: #{tpu_custom_call.1} parent=31 // pred_check
          %p294 = pneg %p153
        $region38: #{tpu_custom_call.1} parent=31 // pred_check_branch
          %296 = sbr.rel (%p294) target = $region40
        $region39: #{tpu_custom_call.1} parent=31 // pred_region
          %p297 = scmp.lt.s32.totalorder %s24, 1
          %s298 = scalar_select %p297, %s24, 1
          %s299 = scalar_lea.vmem %s4, %s298
        $region40: #{tpu_custom_call.1} parent=31 // pred_fallthru
          _
        // Predicated region
        $region41: #{tpu_custom_call.1} parent=31 // pred_check
          %p300 = pneg %p183
        $region42: #{tpu_custom_call.1} parent=31 // pred_check_branch
          %302 = sbr.rel (%p300) target = $region44
        $region43: #{tpu_custom_call.1} parent=31 // pred_region
          %s303 = smul.u32 2, %s25
          %p304 = scmp.lt.s32.totalorder %s23, 1
          %s305 = scalar_select %p304, %s23, 1
          %p306 = scmp.lt.s32.totalorder %s24, 1
          %s307 = scalar_select %p306, %s24, 1
          %p308 = scmp.lt.s32.totalorder %s303, 1
          %s309 = scalar_select %p308, %s303, 1
          %s310 = smul.addr %s307, 2
          %s311 = sadd.s32 %s309, %s310
          %s312 = smul.addr %s305, 4
          %s313 = sadd.s32 %s311, %s312
          %s314 = smul.addr %s313, 8
          %s315 = scalar_lea.vmem %s5, %s314
          %s316 = smul.u32 2, %s25
        $region44: #{tpu_custom_call.1} parent=31 // pred_fallthru
          _
      $region32: #{tpu_custom_call.1} parent=5 // pred_fallthru
        _
      %p317 = scmp.le.s32.totalorder 1, %s16
      %p318 = scmp.lt.s32.totalorder %s16, 5
      %p319 = pnand %p317, %p318
      %p320 = pneg %p319
      // Predicated region
      $region45: #{tpu_custom_call.1} parent=5 // pred_check
        _
      $region46: #{tpu_custom_call.1} parent=5 // pred_check_branch
        %322 = sbr.rel (%p319) target = $region48
      $region47: #{tpu_custom_call.1} parent=5 // pred_region
        %s323 = ssub.s32 %s16, 1
        %s324 = smul.u32 2, %s28
        %p325 = scmp.lt.s32.totalorder %s26, 1
        %s326 = scalar_select %p325, %s26, 1
        %p327 = scmp.lt.s32.totalorder %s27, 1
        %s328 = scalar_select %p327, %s27, 1
        %p329 = scmp.lt.s32.totalorder %s324, 1
        %s330 = scalar_select %p329, %s324, 1
        %s331 = smul.addr %s328, 2
        %s332 = sadd.s32 %s330, %s331
        %s333 = smul.addr %s326, 4
        %s334 = sadd.s32 %s332, %s333
        %s335 = smul.addr %s334, 4
        %s336 = scalar_lea.vmem %s0, %s335
        %p337 = pneg %p65
        %p338 = pneg %p62
        %p339 = pneg %p86
        %p340 = pneg %p83
        %p341 = pneg %p107
        %p342 = pneg %p104
        %s343 = smul.u32 2, %s28
        %p344 = scmp.lt.s32.totalorder %s343, 1
        %s345 = scalar_select %p344, %s343, 1
        %s346 = smul.addr %s345, 8
        %s347 = scalar_lea.vmem %s3, %s346
        %p348 = pneg %p133
        %p349 = pneg %p130
        %p350 = scmp.lt.s32.totalorder %s27, 1
        %s351 = scalar_select %p350, %s27, 1
        %s352 = scalar_lea.vmem %s4, %s351
        %p353 = pneg %p159
        %p354 = pneg %p156
        %s355 = smul.u32 2, %s28
        %p356 = scmp.lt.s32.totalorder %s26, 1
        %s357 = scalar_select %p356, %s26, 1
        %p358 = scmp.lt.s32.totalorder %s27, 1
        %s359 = scalar_select %p358, %s27, 1
        %p360 = scmp.lt.s32.totalorder %s355, 1
        %s361 = scalar_select %p360, %s355, 1
        %s362 = smul.addr %s359, 2
        %s363 = sadd.s32 %s361, %s362
        %s364 = smul.addr %s357, 4
        %s365 = sadd.s32 %s363, %s364
        %s366 = smul.addr %s365, 8
        %s367 = scalar_lea.vmem %s5, %s366
        %p368 = pneg %p189
        %p369 = pneg %p186
        %p370 = pneg %p210
        %p371 = pneg %p207
        %p372 = pneg %p240
        %p373 = pneg %p237
        %s374 = sand.u32 %s227, 1
        %s375 = scalar_lea.sflag [#allocation3], %s374
        %s376 = sand.u32 %s227, 1
        %s377 = smul.addr %s376, 8
        %s378 = scalar_lea.vmem [#allocation2], %s377
        %s379 = smul.u32 2, %s28
        %p380 = scmp.lt.s32.totalorder %s26, 1
        %s381 = scalar_select %p380, %s26, 1
        %p382 = scmp.lt.s32.totalorder %s27, 1
        %s383 = scalar_select %p382, %s27, 1
        %p384 = scmp.lt.s32.totalorder %s379, 1
        %s385 = scalar_select %p384, %s379, 1
        %s386 = smul.addr %s383, 2
        %s387 = sadd.s32 %s385, %s386
        %s388 = smul.addr %s381, 4
        %s389 = sadd.s32 %s387, %s388
        %s390 = smul.addr %s389, 4
        %s391 = scalar_lea.vmem %s0, %s390
        %s392 = smul.u32 2, %s28
        %s393 = smul.u32 2, %s28
        %p394 = scmp.lt.s32.totalorder %s393, 1
        %s395 = scalar_select %p394, %s393, 1
        %s396 = smul.addr %s395, 8
        %s397 = scalar_lea.vmem %s3, %s396
        %s398 = smul.u32 2, %s28
        %p399 = scmp.lt.s32.totalorder %s27, 1
        %s400 = scalar_select %p399, %s27, 1
        %s401 = scalar_lea.vmem %s4, %s400
        %s402 = smul.u32 2, %s28
        %p403 = scmp.lt.s32.totalorder %s26, 1
        %s404 = scalar_select %p403, %s26, 1
        %p405 = scmp.lt.s32.totalorder %s27, 1
        %s406 = scalar_select %p405, %s27, 1
        %p407 = scmp.lt.s32.totalorder %s402, 1
        %s408 = scalar_select %p407, %s402, 1
        %s409 = smul.addr %s406, 2
        %s410 = sadd.s32 %s408, %s409
        %s411 = smul.addr %s404, 4
        %s412 = sadd.s32 %s410, %s411
        %s413 = smul.addr %s412, 8
        %s414 = scalar_lea.vmem %s5, %s413
        %s415 = smul.u32 2, %s28
        %s416 = smul.u32 2, %s28
        %v418 = vld [vmem:[%s391] sm:$0xf]
        %v419 = vld [vmem:[%s391 + $0x4] sm:$0xf]
        %v420 = vld [vmem:[%s1] sm:$0xf]
        %v421 = vld [vmem:[%s1 + $0x4] sm:$0xf]
        %v422 = vld [vmem:[%s1 + $0x8] sm:$0xf]
        %v423 = vld [vmem:[%s1 + $0xc] sm:$0xf]
        %v424 = vld [vmem:[%s1 + $0x10] sm:$0xf]
        %v425 = vld [vmem:[%s1 + $0x14] sm:$0xf]
        %v426 = vld [vmem:[%s2] sm:$0x1]
        %v428 = vlaneseq
        %v429 = vshrl.u32 %v428, 7
        %v430 = vsub.s32 0, %v429
        %v431 = vrot.slane %v426, %v430
        %v435 = vunpack.c.l.b16 %v418
        %v436 = vunpack.c.l.b16 %v419
        %v437 = vpack.c.b16 %v436, %v435
        %v444 = vunpack.c.l.b16 %v420
        %v445 = vunpack.c.l.b16 %v421
        %v446 = vunpack.c.l.b16 %v422
        %v447 = vunpack.c.l.b16 %v423
        %v448 = vunpack.c.l.b16 %v424
        %v449 = vunpack.c.l.b16 %v425
        %v450 = vpack.c.b16 %v445, %v444
        %v451 = vpack.c.b16 %v447, %v446
        %v452 = vpack.c.b16 %v449, %v448
        %vm456 = vcmask 392192
        %v458 = vsel %vm456, %v437, 0
        %460 = vmatprep.subr.bf16.mxu0 0
        %461 = vmatpush1.bf16.msra.mxu0 %v450
        %462 = vmatprep.subr.bf16.mxu0 0
        %463 = vmatpush1.bf16.msra.mxu0 %v451
        %464 = vmatprep.subr.bf16.mxu0 0
        %465 = vmatpush1.bf16.msra.mxu0 %v452
        %466 = vmatprep.subr.bf16.mxu0 0
        %467 = vmatpush1.bf16.msra.mxu0 0
        %468 = vmatprep.subr.bf16.mxu0 0
        %469 = vmatpush1.bf16.msra.mxu0 0
        %470 = vmatprep.subr.bf16.mxu0 0
        %471 = vmatpush1.bf16.msra.mxu0 0
        %472 = vmatprep.subr.bf16.mxu0 0
        %473 = vmatpush1.bf16.msra.mxu0 0
        %474 = vmatprep.subr.bf16.mxu0 0
        %475 = vmatpush1.bf16.msra.mxu0 0
        %476 = vmatprep.subr.bf16.mxu0 0
        %477 = vmatpush1.bf16.msra.mxu0 0
        %478 = vmatprep.subr.bf16.mxu0 0
        %479 = vmatpush1.bf16.msra.mxu0 0
        %480 = vmatprep.subr.bf16.mxu0 0
        %481 = vmatpush1.bf16.msra.mxu0 0
        %482 = vmatprep.subr.bf16.mxu0 0
        %483 = vmatpush1.bf16.msra.mxu0 0
        %484 = vmatprep.subr.bf16.mxu0 0
        %485 = vmatpush1.bf16.msra.mxu0 0
        %486 = vmatprep.subr.bf16.mxu0 0
        %487 = vmatpush1.bf16.msra.mxu0 0
        %488 = vmatprep.subr.bf16.mxu0 0
        %489 = vmatpush1.bf16.msra.mxu0 0
        %490 = vmatprep.subr.bf16.mxu0 0
        %491 = vmatpush1.bf16.msra.mxu0 0
        %492 = vmatprep.mubr.bf16.mxu0 0
        %493 = vmatmul.mubr.bf16.gmra.mrb[0].mxu0 %v458
        %v494 = vpop.f32.mrb[0].mxu0
        %v495 = vadd.f32 %v431, %v494
        %v496 = vpop.f32.mrb[0].mxu0
        %v497 = vpop.f32.mrb[0].mxu0
        %v498 = vadd.f32 %v431, %v497
        %v499 = vpop.f32.mrb[0].mxu0
        %500 = vdwg.mxu0
        %v501 = vld [vmem:[%s397] sm:$0xff]
        %v502 = vld [vmem:[%s397 + $0x8] sm:$0xff]
        %v503 = vadd.f32 %v495, %v501
        %v504 = vadd.f32 %v498, %v502
        %v505 = vld [vmem:[%s401] sm:$0x1]
        %v507 = vlaneseq
        %v508 = vshrl.u32 %v507, 7
        %v509 = vsub.s32 0, %v508
        %v510 = vrot.slane %v505, %v509
        %v512 = vadd.f32 %v503, %v510
        %v513 = vadd.f32 %v504, %v510
        %v514 = vld [vmem:[%s414] sm:$0xff]
        %v515 = vld [vmem:[%s414 + $0x8] sm:$0xff]
        %v516 = vsub.f32 1.0, %v514
        %v517 = vsub.f32 1.0, %v515
        %519 = vset.pattern.permute.xlu0 0
        %520 = vperm.xlu0 %519, %v516
        %v521 = vpop.permute.xlu0 %520
        %524 = vset.pattern.permute.xlu0 0
        %525 = vperm.xlu0 %524, %v517
        %v526 = vpop.permute.xlu0 %525
        %v528 = vmul.f32 %v512, %v521
        %v529 = vmul.f32 %v513, %v526
        %v530 = vld [vmem:[%s6] sm:$0x1]
        %v532 = vlaneseq
        %v533 = vshrl.u32 %v532, 7
        %v534 = vsub.s32 0, %v533
        %v535 = vrot.slane %v530, %v534
        %538 = vset.pattern.permute.xlu0 0
        %539 = vperm.xlu0 %538, %v514
        %v540 = vpop.permute.xlu0 %539
        %543 = vset.pattern.permute.xlu0 0
        %544 = vperm.xlu0 %543, %v515
        %v545 = vpop.permute.xlu0 %544
        %v547 = vmul.f32 %v535, %v540
        %v548 = vmul.f32 %v535, %v545
        %v549 = vadd.f32 %v528, %v547
        %v550 = vadd.f32 %v529, %v548
        %v551 = vpack.c.bf16 %v550, %v549
        %v553 = vunpack.c.l.b16 %v551
        %v554 = vunpack.c.h.b16 %v551
        %v555 = vpack.c.b16 %v553, %v553
        %v556 = vpack.c.b16 %v554, %v554
        %559 = vst [vmem:[%s378] sm:$0xf] %v555
        %560 = vst [vmem:[%s378 + $0x4] sm:$0xf] %v556
        %s561 = sand.u32 %s227, 1
        %s562 = scalar_lea.sflag [#allocation3], %s561
        %s563 = sand.u32 %s227, 1
        %s564 = smul.addr %s563, 8
        %s565 = scalar_lea.vmem [#allocation2], %s564
        // Predicated region
        $region49: #{tpu_custom_call.1} parent=47 // pred_check
          %p566 = pneg %p237
        $region50: #{tpu_custom_call.1} parent=47 // pred_check_branch
          %568 = sbr.rel (%p566) target = $region52
        $region51: #{tpu_custom_call.1} parent=47 // pred_region
          %s569 = smul.u32 2, %s28
          %s571 = ssub.s32 128, 128
          %572 = vsyncadd %s562, %s571
          %s573 = smul.addr %s27, 2
          %s574 = sadd.s32 %s569, %s573
          %s575 = smul.addr %s26, 4
          %s576 = sadd.s32 %s574, %s575
          %s577 = smul.addr %s576, 64
          %s578 = scalar_lea.hbm %s7, %s577
          %s579 = sshll.u32 %s565, 4
          %s580 = int_to_ptr.vmem [resolvable:$true] %s579
          %585 = dma.vmem_to_hbm [thread:$0]  %s580, 128, %s578, %s562, 64, 64, 4
        $region52: #{tpu_custom_call.1} parent=47 // pred_fallthru
          _
      $region48: #{tpu_custom_call.1} parent=5 // pred_fallthru
        _
      %p586 = scmp.le.s32.totalorder 2, %s16
      // Predicated region
      $region53: #{tpu_custom_call.1} parent=5 // pred_check
        %p587 = pneg %p586
      $region54: #{tpu_custom_call.1} parent=5 // pred_check_branch
        %589 = sbr.rel (%p587) target = $region56
      $region55: #{tpu_custom_call.1} parent=5 // pred_region
        %s590 = ssub.s32 %s16, 2
        // Predicated region
        $region57: #{tpu_custom_call.1} parent=55 // pred_check
          %p591 = pneg %p243
        $region58: #{tpu_custom_call.1} parent=55 // pred_check_branch
          %593 = sbr.rel (%p591) target = $region60
        $region59: #{tpu_custom_call.1} parent=55 // pred_region
          %s594 = sand.u32 %s228, 1
          %s595 = scalar_lea.sflag [#allocation3], %s594
          %s596 = sand.u32 %s228, 1
          %s597 = smul.addr %s596, 8
          %s598 = scalar_lea.vmem [#allocation2], %s597
          %599 = dma.done %s595, 128
        $region60: #{tpu_custom_call.1} parent=55 // pred_fallthru
          _
      $region56: #{tpu_custom_call.1} parent=5 // pred_fallthru
        _
    $region6: #{tpu_custom_call.1} parent=1 // loop_footer
      %s20 = sadd.s32 1, %s16
    $region7: #{tpu_custom_call.1} parent=1 // loop_footer_branch
      %15 = sbr.rel target = $region3
    $region8: #{tpu_custom_call.1} parent=1 // loop_exit
      _
    %600 = vsyncpa [#allocation3], 1
    %s601 = scalar_lea.sflag [#allocation3], 1
    %602 = vsyncpa %s601, 1

</llo_original>
